<compile_context>
chip_gen: v7x
topology: tpu7x:2x2x1
jax: 0.10.0
libtpu: 0.0.40
codegen_flags: <defaults>
</compile_context>

<pallas_src>
import numpy as np
import jax
import jax.numpy as jnp
from jax import lax
from jax.experimental import pallas as pl
from jax.experimental.pallas import tpu as pltpu


def _vmem_limit_bytes() -> int:
    # Generation-aware scoped-VMEM budget: ~96 MiB on v5e/v6e (128 MiB physical),
    # ~48 MiB on v7x (64 MiB physical). Falls back to 48 MiB if the query fails.
    try:
        cap = int(pltpu.get_tpu_info().vmem_capacity_bytes)
    except Exception:
        cap = 64 * 1024 * 1024
    return min((cap * 3) // 4, 100 * 1024 * 1024)


def _pick_divisor(n: int, candidates) -> int:
    for c in candidates:
        if c <= n and n % c == 0:
            return c
    return n


# --------------------------------------------------------------------------- #
# Kernel 1: neighbor-label histogram (row- and K-tiled MXU matmul).
# --------------------------------------------------------------------------- #
def _counts_kernel(adj_ref, onehot_ref, counts_ref, n2_ref, acc_ref):
    k = pl.program_id(1)

    @pl.when(k == 0)
    def _():
        acc_ref[...] = jnp.zeros_like(acc_ref)

    acc_ref[...] += jnp.dot(adj_ref[...], onehot_ref[...],
                            preferred_element_type=jnp.float32)

    @pl.when(k == pl.num_programs(1) - 1)
    def _():
        acc = acc_ref[...]
        counts_ref[...] = acc.astype(counts_ref.dtype)
        # squared norm of each count row (exact integers in f32)
        n2_ref[...] = jnp.sum(acc * acc, axis=1, keepdims=True)


# --------------------------------------------------------------------------- #
# Kernel 2: first occurrence of each (label, neighbor-multiset) signature.
# Row-tiled over query rows; the full counts matrix stays VMEM-resident.
# --------------------------------------------------------------------------- #
def _first_occurrence_kernel(counts_ref, n2c_ref, n2r_ref, xc_ref, xr_ref,
                             first_ref):
    tq = first_ref.shape[0]
    n_nodes = counts_ref.shape[0]
    row0 = pl.multiple_of(pl.program_id(0) * tq, tq)

    c_tile = counts_ref[pl.ds(row0, tq), :]                       # (tq, Cp) bf16
    # Gram of the query tile against all rows: contract last dims (A @ B^T).
    g = lax.dot_general(c_tile, counts_ref[...],
                        dimension_numbers=(((1,), (1,)), ((), ())),
                        preferred_element_type=jnp.float32)       # (tq, N)

    n2c = n2c_ref[pl.ds(row0, tq), :]                             # (tq, 1)
    n2r = n2r_ref[...]                                            # (1, N)
    d2 = (n2c + n2r) - (g + g)                                    # exact ints

    xc = xc_ref[pl.ds(row0, tq), :]                               # (tq, 1) int32
    xr = xr_ref[...]                                              # (1, N) int32
    mismatch = jnp.logical_or(d2 > 0.5, xc != xr)                 # (tq, N)

    cj = lax.broadcasted_iota(jnp.int32, (tq, n_nodes), 1)
    first_ref[...] = jnp.min(jnp.where(mismatch, n_nodes, cj),
                             axis=1, keepdims=True)


# --------------------------------------------------------------------------- #
# Kernel 3: consecutive colors in first-occurrence order.
# color[i] = #{ j : first[j] == j (representative) and j < first[i] }
# --------------------------------------------------------------------------- #
def _colors_kernel(first_c_ref, first_r_ref, out_ref):
    tq = out_ref.shape[0]
    n_nodes = first_r_ref.shape[1]
    row0 = pl.multiple_of(pl.program_id(0) * tq, tq)

    f_tile = first_c_ref[pl.ds(row0, tq), :]                      # (tq, 1)
    f_row = first_r_ref[...]                                      # (1, N)

    rep = (f_row == lax.broadcasted_iota(jnp.int32, (1, n_nodes), 1))   # (1, N)
    cj = lax.broadcasted_iota(jnp.int32, (tq, n_nodes), 1)
    counted = jnp.logical_and(rep, cj < f_tile)                   # (tq, N)
    out_ref[...] = jnp.sum(counted.astype(jnp.int32), axis=1, keepdims=True)


# --------------------------------------------------------------------------- #
# Wrapper
# --------------------------------------------------------------------------- #
def wl_conv(x_labels: jnp.ndarray, edge_index: jnp.ndarray,
            num_colors: int) -> jnp.ndarray:
    """One WL update step. x_labels: (N,) int labels in [0, num_colors).
    edge_index: (2, E) int, row=src, col=dst (message src -> dst).
    Returns (N,) int32 new colors (consecutive, first-occurrence order)."""
    N = int(x_labels.shape[0])
    C = int(num_colors)
    Cp = max(128, ((C + 127) // 128) * 128)      # lane-dense label width
    src, dst = edge_index[0], edge_index[1]
    x32 = x_labels.astype(jnp.int32)

    # Dense (dst, src) adjacency with multiplicities, scattered directly in bf16
    # (exact for multiplicities <= 256; no f32 (N,N) intermediate).
    adj = jnp.zeros((N, N), jnp.bfloat16).at[dst, src].add(1.0)
    onehot = jax.nn.one_hot(x32, Cp, dtype=jnp.bfloat16)          # (N, Cp)

    vmem = _vmem_limit_bytes()
    tm = _pick_divisor(N, (512, 256, 128, 64, 32, 16, 8))
    tk = _pick_divisor(N, (2048, 1024, 512, 256, 128))            # else full N

    counts, n2 = pl.pallas_call(
        _counts_kernel,
        out_shape=(jax.ShapeDtypeStruct((N, Cp), jnp.bfloat16),
                   jax.ShapeDtypeStruct((N, 1), jnp.float32)),
        grid=(N // tm, N // tk),
        in_specs=[
            pl.BlockSpec((tm, tk), lambda i, k: (i, k)),          # adjacency tiles
            pl.BlockSpec((tk, Cp), lambda i, k: (k, 0)),          # one-hot K tiles
        ],
        out_specs=(
            pl.BlockSpec((tm, Cp), lambda i, k: (i, 0)),
            pl.BlockSpec((tm, 1), lambda i, k: (i, 0)),
        ),
        scratch_shapes=[pltpu.VMEM((tm, Cp), jnp.float32)],
        compiler_params=pltpu.CompilerParams(
            dimension_semantics=("parallel", "arbitrary"),
            vmem_limit_bytes=vmem),
    )(adj, onehot)

    # Row-tiled relabel: small (tq, N) temporaries instead of (N, N).
    tq = _pick_divisor(N, (256, 128, 64, 32, 16, 8))
    n2_row = n2.reshape(1, N)
    x_col = x32.reshape(N, 1)
    x_row = x32.reshape(1, N)

    first = pl.pallas_call(
        _first_occurrence_kernel,
        out_shape=jax.ShapeDtypeStruct((N, 1), jnp.int32),
        grid=(N // tq,),
        in_specs=[
            pl.BlockSpec((N, Cp), lambda i: (0, 0)),              # counts, resident
            pl.BlockSpec((N, 1), lambda i: (0, 0)),               # n2 column
            pl.BlockSpec((1, N), lambda i: (0, 0)),               # n2 row
            pl.BlockSpec((N, 1), lambda i: (0, 0)),               # labels column
            pl.BlockSpec((1, N), lambda i: (0, 0)),               # labels row
        ],
        out_specs=pl.BlockSpec((tq, 1), lambda i: (i, 0)),
        compiler_params=pltpu.CompilerParams(
            dimension_semantics=("parallel",),
            vmem_limit_bytes=vmem),
    )(counts, n2, n2_row, x_col, x_row)

    colors = pl.pallas_call(
        _colors_kernel,
        out_shape=jax.ShapeDtypeStruct((N, 1), jnp.int32),
        grid=(N // tq,),
        in_specs=[
            pl.BlockSpec((N, 1), lambda i: (0, 0)),               # first, column
            pl.BlockSpec((1, N), lambda i: (0, 0)),               # first, row
        ],
        out_specs=pl.BlockSpec((tq, 1), lambda i: (i, 0)),
        compiler_params=pltpu.CompilerParams(
            dimension_semantics=("parallel",),
            vmem_limit_bytes=vmem),
    )(first, first.reshape(1, N))

    # TODO(synk): output is int32 (PyTorch returns int64) and the hashmap is
    #             per-call only (no cross-call persistence).
    return colors[:, 0]


def _reference_wl(x_np: np.ndarray, edge_np: np.ndarray) -> np.ndarray:
    """Pure-python replica of the PyTorch module's forward (fresh hashmap)."""
    N = x_np.shape[0]
    neighbors = [[] for _ in range(N)]
    for s, d in zip(edge_np[0], edge_np[1]):
        neighbors[int(d)].append(int(x_np[int(s)]))
    hashmap, out = {}, np.empty(N, dtype=np.int64)
    for i in range(N):
        key = (int(x_np[i]), tuple(sorted(neighbors[i])))
        if key not in hashmap:
            hashmap[key] = len(hashmap)
        out[i] = hashmap[key]
    return out


if __name__ == "__main__":
    N = 16           # num_nodes
    C = 8            # number of distinct input labels
    key = jax.random.PRNGKey(0)
    k_lab, k_edge = jax.random.split(key)

    # Node labels.
    x = jax.random.randint(k_lab, (N,), 0, C, dtype=jnp.int32)

    # Edges: bidirectional ring + 16 random extra edges -> (2, 48).
    ring_src = jnp.arange(N, dtype=jnp.int32)
    ring_dst = (ring_src + 1) % N
    rand_edges = jax.random.randint(k_edge, (2, 16), 0, N, dtype=jnp.int32)
    src = jnp.concatenate([ring_src, ring_dst, rand_edges[0]])
    dst = jnp.concatenate([ring_dst, ring_src, rand_edges[1]])
    edge_index = jnp.stack([src, dst], axis=0)          # (2, 48)

    out = wl_conv(x, edge_index, C)
    out = jax.block_until_ready(out)

    ref = _reference_wl(np.asarray(x), np.asarray(edge_index))
    np.testing.assert_array_equal(np.asarray(out, dtype=np.int64), ref)

    print("KERNEL_OK")
</pallas_src>

<mosaic_0001>
module attributes {stable_mosaic.version = 11 : i64} {
  func.func @_counts_kernel(%arg0: i32, %arg1: i32, %arg2: memref<16x16xbf16, #tpu.memory_space<vmem>>, %arg3: memref<16x128xbf16, #tpu.memory_space<vmem>>, %arg4: memref<16x128xbf16, #tpu.memory_space<vmem>>, %arg5: memref<16x1xf32, #tpu.memory_space<vmem>>, %arg6: memref<16x128xf32, #tpu.memory_space<vmem>>) attributes {dimension_semantics = [#tpu.dimension_semantics<parallel>, #tpu.dimension_semantics<arbitrary>], iteration_bounds = array<i64: 1, 1>, scalar_prefetch = 0 : i64, scratch_operands = 1 : i64, tpu.core_type = #tpu.core_type<tc>, window_params = [{transform_indices = @transform_0, window_bounds = array<i64: 16, 16>}, {transform_indices = @transform_1, window_bounds = array<i64: 16, 128>}, {transform_indices = @transform_2, window_bounds = array<i64: 16, 128>}, {transform_indices = @transform_3, window_bounds = array<i64: 16, 1>}]} {
    %c0_i32 = arith.constant 0 : i32
    %0 = arith.cmpi eq, %arg1, %c0_i32 : i32
    %1 = arith.extui %0 : i1 to i32
    %c0_i32_0 = arith.constant 0 : i32
    %2 = arith.cmpi ne, %1, %c0_i32_0 : i32
    scf.if %2 {
      %cst_10 = arith.constant 0.000000e+00 : f32
      %12 = vector.broadcast %cst_10 : f32 to vector<16x128xf32>
      %c0_11 = arith.constant 0 : index
      %c0_12 = arith.constant 0 : index
      %13 = vector.load %arg6[%c0_11, %c0_12] : memref<16x128xf32, #tpu.memory_space<vmem>>, vector<16x128xf32>
      tpu.vector_store %arg6[%c0_11, %c0_12], %12 {strides = array<i32>} : memref<16x128xf32, #tpu.memory_space<vmem>>, vector<16x128xf32>,
    } else {
    }
    %c0 = arith.constant 0 : index
    %c0_1 = arith.constant 0 : index
    %3 = vector.load %arg6[%c0, %c0_1] : memref<16x128xf32, #tpu.memory_space<vmem>>, vector<16x128xf32>
    %c0_2 = arith.constant 0 : index
    %c0_3 = arith.constant 0 : index
    %4 = vector.load %arg2[%c0_2, %c0_3] : memref<16x16xbf16, #tpu.memory_space<vmem>>, vector<16x16xbf16>
    %c0_4 = arith.constant 0 : index
    %c0_5 = arith.constant 0 : index
    %5 = vector.load %arg3[%c0_4, %c0_5] : memref<16x128xbf16, #tpu.memory_space<vmem>>, vector<16x128xbf16>
    %cst = arith.constant dense<0.000000e+00> : vector<16x128xf32>
    %6 = tpu.matmul %4, %5, %cst {dimension_numbers = #tpu.dot_dimension_numbers<[1], [0], [0], [1], [0, 0, 1, 1], [], []>} : vector<16x16xbf16>, vector<16x128xbf16>, vector<16x128xf32> -> vector<16x128xf32>
    %7 = arith.addf %3, %6 : vector<16x128xf32>
    %c0_6 = arith.constant 0 : index
    %c0_7 = arith.constant 0 : index
    %8 = vector.load %arg6[%c0_6, %c0_7] : memref<16x128xf32, #tpu.memory_space<vmem>>, vector<16x128xf32>
    tpu.vector_store %arg6[%c0_6, %c0_7], %7 {strides = array<i32>} : memref<16x128xf32, #tpu.memory_space<vmem>>, vector<16x128xf32>,
    %c0_i32_8 = arith.constant 0 : i32
    %9 = arith.cmpi eq, %arg1, %c0_i32_8 : i32
    %10 = arith.extui %9 : i1 to i32
    %c0_i32_9 = arith.constant 0 : i32
    %11 = arith.cmpi ne, %10, %c0_i32_9 : i32
    scf.if %11 {
      %c0_10 = arith.constant 0 : index
      %c0_11 = arith.constant 0 : index
      %12 = vector.load %arg6[%c0_10, %c0_11] : memref<16x128xf32, #tpu.memory_space<vmem>>, vector<16x128xf32>
      %13 = arith.truncf %12 : vector<16x128xf32> to vector<16x128xbf16>
      %c0_12 = arith.constant 0 : index
      %c0_13 = arith.constant 0 : index
      %14 = vector.load %arg4[%c0_12, %c0_13] : memref<16x128xbf16, #tpu.memory_space<vmem>>, vector<16x128xbf16>
      tpu.vector_store %arg4[%c0_12, %c0_13], %13 {strides = array<i32>} : memref<16x128xbf16, #tpu.memory_space<vmem>>, vector<16x128xbf16>,
      %15 = arith.mulf %12, %12 : vector<16x128xf32>
      %cst_14 = arith.constant dense<0.000000e+00> : vector<16xf32>
      %16 = vector.multi_reduction <add>, %15, %cst_14 [1] : vector<16x128xf32> to vector<16xf32>
      %17 = vector.shape_cast %16 : vector<16xf32> to vector<16x1xf32>
      %c0_15 = arith.constant 0 : index
      %c0_16 = arith.constant 0 : index
      %18 = vector.load %arg5[%c0_15, %c0_16] : memref<16x1xf32, #tpu.memory_space<vmem>>, vector<16x1xf32>
      tpu.vector_store %arg5[%c0_15, %c0_16], %17 {strides = array<i32>} : memref<16x1xf32, #tpu.memory_space<vmem>>, vector<16x1xf32>,
    } else {
    }
    return
  }
  func.func @transform_0(%arg0: i32, %arg1: i32) -> (i32, i32) {
    %c0_i32 = arith.constant 0 : i32
    return %arg0, %arg1 : i32, i32
  }
  func.func @transform_1(%arg0: i32, %arg1: i32) -> (i32, i32) {
    %c0_i32 = arith.constant 0 : i32
    %c0_i32_0 = arith.constant 0 : i32
    return %arg1, %c0_i32 : i32, i32
  }
  func.func @transform_2(%arg0: i32, %arg1: i32) -> (i32, i32) {
    %c0_i32 = arith.constant 0 : i32
    %c0_i32_0 = arith.constant 0 : i32
    return %arg0, %c0_i32 : i32, i32
  }
  func.func @transform_3(%arg0: i32, %arg1: i32) -> (i32, i32) {
    %c0_i32 = arith.constant 0 : i32
    %c0_i32_0 = arith.constant 0 : i32
    return %arg0, %c0_i32 : i32, i32
  }
}

</mosaic_0001>

<llo_original>
// kernel: tpu_custom_call.1
$region0: #{tpu_custom_call.1}
  #allocation0 [shape = 'u32[]', space=smem, size = 0x4, offset = 0x4, fixed_abs, tag = 'smem constant byte address 0x4 - core index']
  #allocation1 [shape = 'u32[144,128]{1,0:T(1,128)}', space=vmem, size = 0x12000, scoped, tag = 'internal scratch']
  #allocation2 [shape = 'f32[16,128]{1,0:T(8,128)}', space=vmem, size = 0x2000, scoped, tag = 'scratch operand']
  %s0 = inlined_call_operand.hbm [shape: bf16[16,16], index: 0, kind: input, shape index: {}]
  %s1 = inlined_call_operand.hbm [shape: bf16[16,128], index: 1, kind: input, shape index: {}]
  %s2 = inlined_call_operand.hbm [shape: bf16[16,128], index: 2, kind: output, shape index: {0}]
  %s3 = inlined_call_operand.vmem [shape: f32[16,1], index: 3, kind: output, shape index: {1}]
  %4 = xla_tuple %s2, %s3
  %s5 = sld [smem:[#allocation0]]
  $region42: #{tpu_custom_call.1} parent=0
    _
  %s7 = ssub.s32 1, %s5
  %s8 = scalar_select 0, %s7, %s5
  $region1: #{tpu_custom_call.1} parent=0
    #allocation3 [shape = 'u8[4096]{0}', space=vmem, size = 0x1000, scoped, tag = 'input window, operand 0, single buffered']
    #allocation4 [shape = 's32[1]{0}', space=sflag, size = 0x4, scoped, tag = 'scoped memory for tpu_custom_call.1']
    #allocation5 [shape = 's32[1]{0}', space=sflag, size = 0x4, scoped, tag = 'scoped memory for tpu_custom_call.1']
    #allocation6 [shape = 'u8[4096]{0}', space=vmem, size = 0x1000, scoped, tag = 'input window, operand 1, single buffered']
    #allocation7 [shape = 's32[1]{0}', space=sflag, size = 0x4, scoped, tag = 'scoped memory for tpu_custom_call.1']
    #allocation8 [shape = 'u8[4096]{0}', space=vmem, size = 0x1000, scoped, tag = 'output window, operand 0, single buffered']
    %9 = vsyncpa [#allocation4], 0
    %10 = vsyncpa [#allocation7], 0
    %11 = vsyncpa [#allocation5], 0
    // Predicated region
    $region2: #{tpu_custom_call.1} parent=1 // pred_check
      _
    $region3: #{tpu_custom_call.1} parent=1 // pred_check_branch
      %13 = sbr.rel (0) target = $region5
    $region4: #{tpu_custom_call.1} parent=1 // pred_region
      %s15 = ssub.s32 128, 128
      %16 = vsyncadd [#allocation4], %s15
      %s17 = sshll.u32 [#allocation3], 4
      %s18 = int_to_ptr.vmem [resolvable:$true] %s17
      %23 = dma.hbm_to_vmem [thread:$0]  %s0, 128, %s18, [#allocation4], 64, 64, 4
    $region5: #{tpu_custom_call.1} parent=1 // pred_fallthru
      _
    // Predicated region
    $region6: #{tpu_custom_call.1} parent=1 // pred_check
      _
    $region7: #{tpu_custom_call.1} parent=1 // pred_check_branch
      %25 = sbr.rel (0) target = $region9
    $region8: #{tpu_custom_call.1} parent=1 // pred_region
      %s27 = ssub.s32 128, 128
      %28 = vsyncadd [#allocation7], %s27
      %s29 = sshll.u32 [#allocation6], 4
      %s30 = int_to_ptr.vmem [resolvable:$true] %s29
      %35 = dma.hbm_to_vmem [thread:$0]  %s1, 128, %s30, [#allocation7], 64, 64, 4
    $region9: #{tpu_custom_call.1} parent=1 // pred_fallthru
      _
    // Predicated region
    $region10: #{tpu_custom_call.1} parent=1 // pred_check
      _
    $region11: #{tpu_custom_call.1} parent=1 // pred_check_branch
      %37 = sbr.rel (0) target = $region13
    $region12: #{tpu_custom_call.1} parent=1 // pred_region
      %38 = dma.done [#allocation4], 128
    $region13: #{tpu_custom_call.1} parent=1 // pred_fallthru
      _
    // Predicated region
    $region14: #{tpu_custom_call.1} parent=1 // pred_check
      _
    $region15: #{tpu_custom_call.1} parent=1 // pred_check_branch
      %40 = sbr.rel (0) target = $region17
    $region16: #{tpu_custom_call.1} parent=1 // pred_region
      %41 = dma.done [#allocation7], 128
    $region17: #{tpu_custom_call.1} parent=1 // pred_fallthru
      _
    %p43 = scmp.eq.s32.totalorder 0, 0
    // Predicated region
    $region18: #{tpu_custom_call.1} parent=1 // pred_check
      %p44 = pneg %p43
    $region19: #{tpu_custom_call.1} parent=1 // pred_check_branch
      %46 = sbr.rel (%p44) target = $region21
    $region20: #{tpu_custom_call.1} parent=1 // pred_region
      %47 = vst [vmem:[#allocation2] sm:$0xff] 0.0
      %48 = vst [vmem:[#allocation2 + $0x8] sm:$0xff] 0.0
    $region21: #{tpu_custom_call.1} parent=1 // pred_fallthru
      _
    %v49 = vld [vmem:[#allocation2] sm:$0xff]
    %v50 = vld [vmem:[#allocation2 + $0x8] sm:$0xff]
    %v51 = vld [vmem:[#allocation3] sm:$0xf]
    %v52 = vld [vmem:[#allocation3 + $0x4] sm:$0xf]
    %v53 = vld [vmem:[#allocation6] sm:$0xf]
    %v54 = vld [vmem:[#allocation6 + $0x4] sm:$0xf]
    %v57 = vunpack.c.l.b16 %v51
    %v58 = vunpack.c.l.b16 %v52
    %v59 = vpack.c.b16 %v58, %v57
    %v62 = vunpack.c.l.b16 %v53
    %v63 = vunpack.c.l.b16 %v54
    %v64 = vpack.c.b16 %v63, %v62
    %vm66 = vcmask 130048
    %v68 = vsel %vm66, %v59, 0
    %70 = vmatprep.subr.bf16.mxu0 0
    %71 = vmatpush1.bf16.msra.mxu0 %v64
    %72 = vmatprep.subr.bf16.mxu0 0
    %73 = vmatpush1.bf16.msra.mxu0 0
    %74 = vmatprep.subr.bf16.mxu0 0
    %75 = vmatpush1.bf16.msra.mxu0 0
    %76 = vmatprep.subr.bf16.mxu0 0
    %77 = vmatpush1.bf16.msra.mxu0 0
    %78 = vmatprep.subr.bf16.mxu0 0
    %79 = vmatpush1.bf16.msra.mxu0 0
    %80 = vmatprep.subr.bf16.mxu0 0
    %81 = vmatpush1.bf16.msra.mxu0 0
    %82 = vmatprep.subr.bf16.mxu0 0
    %83 = vmatpush1.bf16.msra.mxu0 0
    %84 = vmatprep.subr.bf16.mxu0 0
    %85 = vmatpush1.bf16.msra.mxu0 0
    %86 = vmatprep.subr.bf16.mxu0 0
    %87 = vmatpush1.bf16.msra.mxu0 0
    %88 = vmatprep.subr.bf16.mxu0 0
    %89 = vmatpush1.bf16.msra.mxu0 0
    %90 = vmatprep.subr.bf16.mxu0 0
    %91 = vmatpush1.bf16.msra.mxu0 0
    %92 = vmatprep.subr.bf16.mxu0 0
    %93 = vmatpush1.bf16.msra.mxu0 0
    %94 = vmatprep.subr.bf16.mxu0 0
    %95 = vmatpush1.bf16.msra.mxu0 0
    %96 = vmatprep.subr.bf16.mxu0 0
    %97 = vmatpush1.bf16.msra.mxu0 0
    %98 = vmatprep.subr.bf16.mxu0 0
    %99 = vmatpush1.bf16.msra.mxu0 0
    %100 = vmatprep.subr.bf16.mxu0 0
    %101 = vmatpush1.bf16.msra.mxu0 0
    %102 = vmatprep.mubr.bf16.mxu0 0
    %103 = vmatmul.mubr.bf16.gmra.mrb[0].mxu0 %v68
    %v104 = vpop.f32.mrb[0].mxu0
    %v105 = vadd.f32 0.0, %v104
    %v106 = vpop.f32.mrb[0].mxu0
    %v107 = vpop.f32.mrb[0].mxu0
    %v108 = vadd.f32 0.0, %v107
    %v109 = vpop.f32.mrb[0].mxu0
    %110 = vdwg.mxu0
    %v111 = vadd.f32 %v49, %v105
    %v112 = vadd.f32 %v50, %v108
    %113 = vst [vmem:[#allocation2] sm:$0xff] %v111
    %114 = vst [vmem:[#allocation2 + $0x8] sm:$0xff] %v112
    // Predicated region
    $region22: #{tpu_custom_call.1} parent=1 // pred_check
      %p115 = pneg %p43
    $region23: #{tpu_custom_call.1} parent=1 // pred_check_branch
      %117 = sbr.rel (%p115) target = $region25
    $region24: #{tpu_custom_call.1} parent=1 // pred_region
      %v118 = vld [vmem:[#allocation2] sm:$0xff]
      %v119 = vld [vmem:[#allocation2 + $0x8] sm:$0xff]
      %v120 = vpack.c.bf16 %v119, %v118
      %v122 = vunpack.c.l.b16 %v120
      %v123 = vunpack.c.h.b16 %v120
      %v124 = vpack.c.b16 %v122, %v122
      %v125 = vpack.c.b16 %v123, %v123
      %128 = vst [vmem:[#allocation8] sm:$0xf] %v124
      %129 = vst [vmem:[#allocation8 + $0x4] sm:$0xf] %v125
      %v130 = vmul.f32 %v118, %v118
      %v131 = vmul.f32 %v119, %v119
      %132 = vadd.xlane.f32.xlu0 %v130
      %v133 = vpop.xlane.xlu0 %132
      %134 = vadd.xlane.f32.xlu0 %v131
      %v135 = vpop.xlane.xlu0 %134
      %vm136 = vcmask 7168
      %137 = vst.msk [vmem:[%s3] sm:$0xff] %vm136, %v133
      %138 = vst.msk [vmem:[%s3 + $0x8] sm:$0xff] %vm136, %v135
    $region25: #{tpu_custom_call.1} parent=1 // pred_fallthru
      _
    // Predicated region
    $region26: #{tpu_custom_call.1} parent=1 // pred_check
      _
    $region27: #{tpu_custom_call.1} parent=1 // pred_check_branch
      %140 = sbr.rel (0) target = $region29
    $region28: #{tpu_custom_call.1} parent=1 // pred_region
      %s142 = ssub.s32 128, 128
      %143 = vsyncadd [#allocation5], %s142
      %s144 = sshll.u32 [#allocation8], 4
      %s145 = int_to_ptr.vmem [resolvable:$true] %s144
      %150 = dma.vmem_to_hbm [thread:$0]  %s145, 128, %s2, [#allocation5], 64, 64, 4
    $region29: #{tpu_custom_call.1} parent=1 // pred_fallthru
      _
    // Predicated region
    $region30: #{tpu_custom_call.1} parent=1 // pred_check
      _
    $region31: #{tpu_custom_call.1} parent=1 // pred_check_branch
      %152 = sbr.rel (0) target = $region33
    $region32: #{tpu_custom_call.1} parent=1 // pred_region
      _
    $region33: #{tpu_custom_call.1} parent=1 // pred_fallthru
      _
    // Predicated region
    $region34: #{tpu_custom_call.1} parent=1 // pred_check
      _
    $region35: #{tpu_custom_call.1} parent=1 // pred_check_branch
      %154 = sbr.rel (0) target = $region37
    $region36: #{tpu_custom_call.1} parent=1 // pred_region
      %155 = dma.done [#allocation5], 128
    $region37: #{tpu_custom_call.1} parent=1 // pred_fallthru
      _
    // Predicated region
    $region38: #{tpu_custom_call.1} parent=1 // pred_check
      _
    $region39: #{tpu_custom_call.1} parent=1 // pred_check_branch
      %157 = sbr.rel (0) target = $region41
    $region40: #{tpu_custom_call.1} parent=1 // pred_region
      _
    $region41: #{tpu_custom_call.1} parent=1 // pred_fallthru
      _
    %158 = vsyncpa [#allocation4], 1
    %159 = vsyncpa [#allocation7], 1
    %160 = vsyncpa [#allocation5], 1

</llo_original>
